<compile_context>
chip_gen: v5e
topology: v5e:2x2
jax: 0.10.0
libtpu: 0.0.40
codegen_flags: <defaults>
</compile_context>

<pallas_src>
import functools

import jax
import jax.numpy as jnp
from jax.experimental import pallas as pl
from jax.experimental.pallas import tpu as pltpu


def cross_output_kernel(x_ref, res_ref, w_ref, b_ref, gamma_ref, beta_ref, o_ref):
    # x_ref:     (tm, I)   hidden_states tile (native / mxu dtype)
    # res_ref:   (tm, H)   input_tensor (residual) tile
    # w_ref:     (I, H)    dense weight (pre-transposed), grid-invariant
    # b_ref:     (1, H)    dense bias
    # gamma_ref: (1, H)    LayerNorm weight
    # beta_ref:  (1, H)    LayerNorm bias
    # o_ref:     (tm, H)   output tile

    # Dense: native-dtype operands straight into the MXU, f32 accumulation.
    h = jnp.dot(x_ref[...], w_ref[...], preferred_element_type=jnp.float32)

    # Dropout is identity at inference time (no-op here).
    # Fused bias + residual add, in f32.
    h = h + (res_ref[...].astype(jnp.float32) + b_ref[...].astype(jnp.float32))

    # LayerNorm over last dim, one-pass mean/variance (biased), eps=1e-12.
    inv_h = jnp.float32(1.0 / h.shape[-1])
    s1 = jnp.sum(h, axis=-1, keepdims=True)
    s2 = jnp.sum(h * h, axis=-1, keepdims=True)
    mean = s1 * inv_h
    var = jnp.maximum(s2 * inv_h - mean * mean, 0.0)
    inv = jax.lax.rsqrt(var + 1e-12)
    y = (h - mean) * inv * gamma_ref[...].astype(jnp.float32) \
        + beta_ref[...].astype(jnp.float32)

    o_ref[...] = y.astype(o_ref.dtype)


def _round_up(x, m):
    return ((x + m - 1) // m) * m


@functools.partial(jax.jit, static_argnames=("tm", "mxu_dtype", "alias_residual"))
def cross_output(hidden_states, input_tensor, w, b, gamma, beta, *,
                 tm=512, mxu_dtype=None, alias_residual=False):
    """hidden_states: (B, S, I); input_tensor: (B, S, H); w: (I, H) (= W^T).

    tm:        row tile (sweep 512-1024 on v5e/v6e; keep <= 512 on v7x).
    mxu_dtype: optional cast for the matmul operands (e.g. jnp.bfloat16 on v5e).
    alias_residual: alias input_tensor's buffer to the output; only set True if
                    the caller donates input_tensor, otherwise XLA copies.
    """
    B, S, I = hidden_states.shape
    H = input_tensor.shape[-1]
    M = B * S
    out_dtype = hidden_states.dtype

    # Row-tile selection: as large as requested (fills the MXU M dim, amortizes
    # per-grid-step overhead), multiple of 8 (f32 sublane), clamped to the
    # problem size.  Keep >= 2 grid steps when the problem allows it so both
    # v7x TensorCores get work and DMA/compute overlap per core.
    tm_eff = max(8, min(tm, _round_up(M, 8)))
    if M > 8 and pl.cdiv(M, tm_eff) < 2:
        tm_eff = max(8, _round_up(pl.cdiv(M, 2), 8))
    grid = (pl.cdiv(M, tm_eff),)  # ragged last tile: OOB stores are masked,
                                  # garbage rows are per-row LN -> harmless.

    x2d = hidden_states.reshape(M, I)
    r2d = input_tensor.reshape(M, H)
    w_in = w
    if mxu_dtype is not None:
        x2d = x2d.astype(mxu_dtype)
        w_in = w.astype(mxu_dtype)
    b2d = b.reshape(1, H)
    g2d = gamma.reshape(1, H)
    bt2d = beta.reshape(1, H)

    itemsize = lambda a: jnp.dtype(a.dtype).itemsize

    # Right-sized VMEM budget (leaves headroom for Mosaic internal scratch on
    # v7x's 64 MiB VMEM instead of blindly requesting 64 MiB).
    vmem_needed = (
        2 * tm_eff * I * itemsize(x2d)        # hidden_states tiles (double-buffered)
        + 2 * tm_eff * H * itemsize(r2d)      # residual tiles
        + 2 * tm_eff * H * itemsize(x2d)      # output tiles
        + 1 * I * H * itemsize(w_in)          # weight (single-buffered)
        + 3 * H * 4                           # bias / gamma / beta
        + 4 * tm_eff * H * 4                  # f32 LayerNorm temporaries
    )
    vmem_limit = int(min(max(int(vmem_needed * 1.25) + (2 << 20), 8 << 20), 96 << 20))

    cost = pl.CostEstimate(
        flops=2 * M * I * H + 8 * M * H,
        transcendentals=M,  # one rsqrt per row (advisory)
        bytes_accessed=(M * I * itemsize(x2d)
                        + M * H * itemsize(r2d)
                        + M * H * itemsize(hidden_states)
                        + I * H * itemsize(w_in)
                        + 3 * H * itemsize(b)),
    )

    # Residual -> output aliasing is safe (each tile is read in the same grid
    # step that overwrites it), but only saves an HBM stream if input_tensor is
    # donated by the caller; otherwise XLA inserts a defensive copy, so it is
    # opt-in.
    io_alias = {1: 0} if (alias_residual and r2d.dtype == out_dtype) else {}

    out = pl.pallas_call(
        cross_output_kernel,
        out_shape=jax.ShapeDtypeStruct((M, H), out_dtype),
        grid_spec=pltpu.PrefetchScalarGridSpec(
            num_scalar_prefetch=0,
            grid=grid,
            in_specs=[
                pl.BlockSpec((tm_eff, I), lambda i: (i, 0)),   # hidden_states tile
                pl.BlockSpec((tm_eff, H), lambda i: (i, 0)),   # residual tile
                # Grid-invariant operands: constant index map (fetched once,
                # VMEM-resident) + single-buffered (no wasted second buffer).
                pl.BlockSpec((I, H), lambda i: (0, 0),
                             pipeline_mode=pl.Buffered(1)),    # weight
                pl.BlockSpec((1, H), lambda i: (0, 0),
                             pipeline_mode=pl.Buffered(1)),    # bias
                pl.BlockSpec((1, H), lambda i: (0, 0),
                             pipeline_mode=pl.Buffered(1)),    # gamma
                pl.BlockSpec((1, H), lambda i: (0, 0),
                             pipeline_mode=pl.Buffered(1)),    # beta
            ],
            out_specs=pl.BlockSpec((tm_eff, H), lambda i: (i, 0)),
        ),
        compiler_params=pltpu.CompilerParams(
            dimension_semantics=("parallel",),
            vmem_limit_bytes=vmem_limit,
        ),
        cost_estimate=cost,
        input_output_aliases=io_alias,
    )(x2d, r2d, w_in, b2d, g2d, bt2d)

    return out.reshape(B, S, H)


def reference(hidden_states, input_tensor, w, b, gamma, beta):
    h = jnp.einsum("bsi,ih->bsh", hidden_states.astype(jnp.float32),
                   w.astype(jnp.float32)) + b
    h = h + input_tensor.astype(jnp.float32)
    mean = jnp.mean(h, axis=-1, keepdims=True)
    var = jnp.mean((h - mean) ** 2, axis=-1, keepdims=True)
    return ((h - mean) * jax.lax.rsqrt(var + 1e-12)) * gamma + beta


if __name__ == "__main__":
    # config: intermediate_size=128, hidden_size=32; batch=2, seq=8
    B, S, I, H = 2, 8, 128, 32

    key = jax.random.PRNGKey(0)
    k1, k2, k3, k4, k5, k6 = jax.random.split(key, 6)

    hidden_states = jax.random.normal(k1, (B, S, I), dtype=jnp.float32)
    input_tensor = jax.random.normal(k2, (B, S, H), dtype=jnp.float32)

    # Deterministic parameter init (Linear: weight (H, I), bias (H)); we store W^T.
    w_t = (jax.random.normal(k3, (H, I), dtype=jnp.float32) * (1.0 / I ** 0.5)).T  # (I, H)
    b = jax.random.normal(k4, (H,), dtype=jnp.float32) * 0.01
    gamma = jnp.ones((H,), dtype=jnp.float32) + 0.1 * jax.random.normal(k5, (H,), dtype=jnp.float32)
    beta = 0.1 * jax.random.normal(k6, (H,), dtype=jnp.float32)

    ref = reference(hidden_states, input_tensor, w_t, b, gamma, beta)

    out = cross_output(hidden_states, input_tensor, w_t, b, gamma, beta)
    out = jax.block_until_ready(out)

    assert out.shape == (B, S, H)
    assert jnp.allclose(out, ref.astype(out.dtype), atol=1e-4, rtol=1e-4)

    print("KERNEL_OK")
</pallas_src>

<mosaic_0001>
module attributes {stable_mosaic.version = 11 : i64} {
  func.func @cross_output_kernel(%arg0: i32, %arg1: memref<8x128xf32, #tpu.memory_space<vmem>>, %arg2: memref<8x32xf32, #tpu.memory_space<vmem>>, %arg3: memref<128x32xf32, #tpu.memory_space<vmem>>, %arg4: memref<1x32xf32, #tpu.memory_space<vmem>>, %arg5: memref<1x32xf32, #tpu.memory_space<vmem>>, %arg6: memref<1x32xf32, #tpu.memory_space<vmem>>, %arg7: memref<8x32xf32, #tpu.memory_space<vmem>>) attributes {dimension_semantics = [#tpu.dimension_semantics<parallel>], iteration_bounds = array<i64: 2>, scalar_prefetch = 0 : i64, scratch_operands = 0 : i64, tpu.core_type = #tpu.core_type<tc>, window_params = [{transform_indices = @transform_0, window_bounds = array<i64: 8, 128>}, {transform_indices = @transform_1, window_bounds = array<i64: 8, 32>}, {pipeline_mode = #tpu.pipeline_mode<synchronous>, transform_indices = @transform_2, window_bounds = array<i64: 128, 32>}, {pipeline_mode = #tpu.pipeline_mode<synchronous>, transform_indices = @transform_3, window_bounds = array<i64: 1, 32>}, {pipeline_mode = #tpu.pipeline_mode<synchronous>, transform_indices = @transform_4, window_bounds = array<i64: 1, 32>}, {pipeline_mode = #tpu.pipeline_mode<synchronous>, transform_indices = @transform_5, window_bounds = array<i64: 1, 32>}, {transform_indices = @transform_6, window_bounds = array<i64: 8, 32>}]} {
    %c0 = arith.constant 0 : index
    %c0_0 = arith.constant 0 : index
    %0 = vector.load %arg1[%c0, %c0_0] : memref<8x128xf32, #tpu.memory_space<vmem>>, vector<8x128xf32>
    %c0_1 = arith.constant 0 : index
    %c0_2 = arith.constant 0 : index
    %1 = vector.load %arg3[%c0_1, %c0_2] : memref<128x32xf32, #tpu.memory_space<vmem>>, vector<128x32xf32>
    %cst = arith.constant dense<0.000000e+00> : vector<8x32xf32>
    %2 = tpu.matmul %0, %1, %cst {dimension_numbers = #tpu.dot_dimension_numbers<[1], [0], [0], [1], [0, 0, 1, 1], [], []>} : vector<8x128xf32>, vector<128x32xf32>, vector<8x32xf32> -> vector<8x32xf32>
    %c0_3 = arith.constant 0 : index
    %c0_4 = arith.constant 0 : index
    %3 = vector.load %arg2[%c0_3, %c0_4] : memref<8x32xf32, #tpu.memory_space<vmem>>, vector<8x32xf32>
    %c0_5 = arith.constant 0 : index
    %c0_6 = arith.constant 0 : index
    %4 = vector.load %arg4[%c0_5, %c0_6] : memref<1x32xf32, #tpu.memory_space<vmem>>, vector<1x32xf32>
    %5 = vector.broadcast %4 : vector<1x32xf32> to vector<8x32xf32>
    %6 = arith.addf %3, %5 : vector<8x32xf32>
    %7 = arith.addf %2, %6 : vector<8x32xf32>
    %cst_7 = arith.constant dense<0.000000e+00> : vector<8xf32>
    %8 = vector.multi_reduction <add>, %7, %cst_7 [1] : vector<8x32xf32> to vector<8xf32>
    %9 = vector.shape_cast %8 : vector<8xf32> to vector<8x1xf32>
    %10 = arith.mulf %7, %7 : vector<8x32xf32>
    %cst_8 = arith.constant dense<0.000000e+00> : vector<8xf32>
    %11 = vector.multi_reduction <add>, %10, %cst_8 [1] : vector<8x32xf32> to vector<8xf32>
    %12 = vector.shape_cast %11 : vector<8xf32> to vector<8x1xf32>
    %cst_9 = arith.constant 3.125000e-02 : f32
    %13 = vector.broadcast %cst_9 : f32 to vector<8x1xf32>
    %14 = arith.mulf %9, %13 : vector<8x1xf32>
    %cst_10 = arith.constant 3.125000e-02 : f32
    %15 = vector.broadcast %cst_10 : f32 to vector<8x1xf32>
    %16 = arith.mulf %12, %15 : vector<8x1xf32>
    %17 = arith.mulf %14, %14 : vector<8x1xf32>
    %18 = arith.subf %16, %17 : vector<8x1xf32>
    %cst_11 = arith.constant 0.000000e+00 : f32
    %19 = vector.broadcast %cst_11 : f32 to vector<8x1xf32>
    %20 = arith.maximumf %18, %19 : vector<8x1xf32>
    %cst_12 = arith.constant 9.99999996E-13 : f32
    %21 = vector.broadcast %cst_12 : f32 to vector<8x1xf32>
    %22 = arith.addf %20, %21 : vector<8x1xf32>
    %23 = math.rsqrt %22 : vector<8x1xf32>
    %24 = vector.broadcast %14 : vector<8x1xf32> to vector<8x32xf32>
    %25 = arith.subf %7, %24 : vector<8x32xf32>
    %26 = vector.broadcast %23 : vector<8x1xf32> to vector<8x32xf32>
    %27 = arith.mulf %25, %26 : vector<8x32xf32>
    %c0_13 = arith.constant 0 : index
    %c0_14 = arith.constant 0 : index
    %28 = vector.load %arg5[%c0_13, %c0_14] : memref<1x32xf32, #tpu.memory_space<vmem>>, vector<1x32xf32>
    %29 = vector.broadcast %28 : vector<1x32xf32> to vector<8x32xf32>
    %30 = arith.mulf %27, %29 : vector<8x32xf32>
    %c0_15 = arith.constant 0 : index
    %c0_16 = arith.constant 0 : index
    %31 = vector.load %arg6[%c0_15, %c0_16] : memref<1x32xf32, #tpu.memory_space<vmem>>, vector<1x32xf32>
    %32 = vector.broadcast %31 : vector<1x32xf32> to vector<8x32xf32>
    %33 = arith.addf %30, %32 : vector<8x32xf32>
    %c0_17 = arith.constant 0 : index
    %c0_18 = arith.constant 0 : index
    %34 = vector.load %arg7[%c0_17, %c0_18] : memref<8x32xf32, #tpu.memory_space<vmem>>, vector<8x32xf32>
    tpu.vector_store %arg7[%c0_17, %c0_18], %33 {strides = array<i32>} : memref<8x32xf32, #tpu.memory_space<vmem>>, vector<8x32xf32>,
    return
  }
  func.func @transform_0(%arg0: i32) -> (i32, i32) {
    %c0_i32 = arith.constant 0 : i32
    %c0_i32_0 = arith.constant 0 : i32
    return %arg0, %c0_i32 : i32, i32
  }
  func.func @transform_1(%arg0: i32) -> (i32, i32) {
    %c0_i32 = arith.constant 0 : i32
    %c0_i32_0 = arith.constant 0 : i32
    return %arg0, %c0_i32 : i32, i32
  }
  func.func @transform_2(%arg0: i32) -> (i32, i32) {
    %c0_i32 = arith.constant 0 : i32
    %c0_i32_0 = arith.constant 0 : i32
    %c0_i32_1 = arith.constant 0 : i32
    return %c0_i32, %c0_i32_0 : i32, i32
  }
  func.func @transform_3(%arg0: i32) -> (i32, i32) {
    %c0_i32 = arith.constant 0 : i32
    %c0_i32_0 = arith.constant 0 : i32
    %c0_i32_1 = arith.constant 0 : i32
    return %c0_i32, %c0_i32_0 : i32, i32
  }
  func.func @transform_4(%arg0: i32) -> (i32, i32) {
    %c0_i32 = arith.constant 0 : i32
    %c0_i32_0 = arith.constant 0 : i32
    %c0_i32_1 = arith.constant 0 : i32
    return %c0_i32, %c0_i32_0 : i32, i32
  }
  func.func @transform_5(%arg0: i32) -> (i32, i32) {
    %c0_i32 = arith.constant 0 : i32
    %c0_i32_0 = arith.constant 0 : i32
    %c0_i32_1 = arith.constant 0 : i32
    return %c0_i32, %c0_i32_0 : i32, i32
  }
  func.func @transform_6(%arg0: i32) -> (i32, i32) {
    %c0_i32 = arith.constant 0 : i32
    %c0_i32_0 = arith.constant 0 : i32
    return %arg0, %c0_i32 : i32, i32
  }
}

</mosaic_0001>

<llo_original>
// kernel: cross_output.1
$region0: #{cross_output.1}
  #allocation0 [shape = 'u32[]', space=smem, size = 0x4, offset = 0x4, fixed_abs, tag = 'smem constant byte address 0x4 - core index']
  #allocation1 [shape = 'u32[72,128]{1,0:T(1,128)}', space=vmem, size = 0x9000, scoped, tag = 'internal scratch']
  %s0 = inlined_call_operand.vmem [shape: f32[16,128], index: 0, kind: input, shape index: {}]
  %s1 = inlined_call_operand.vmem [shape: f32[16,32], index: 1, kind: input, shape index: {}]
  %s2 = inlined_call_operand.vmem [shape: f32[128,32], index: 2, kind: input, shape index: {}]
  %s3 = inlined_call_operand.vmem [shape: f32[1,32], index: 3, kind: input, shape index: {}]
  %s4 = inlined_call_operand.vmem [shape: f32[1,32], index: 4, kind: input, shape index: {}]
  %s5 = inlined_call_operand.vmem [shape: f32[1,32], index: 5, kind: input, shape index: {}]
  %s6 = inlined_call_operand.hbm [shape: f32[16,32], index: 6, kind: output, shape index: {}]
  %s7 = sld [smem:[#allocation0]]
  $region57: #{cross_output.1} parent=0
    _
  %s9 = ssub.s32 1, %s7
  %s10 = scalar_select 0, %s9, %s7
  $region1: #{cross_output.1} parent=0
    #allocation2 [shape = 'u8[8192]{0}', space=vmem, size = 0x2000, scoped, tag = 'output window, operand 0']
    #allocation3 [shape = 's32[2]{0}', space=sflag, size = 0x8, scoped, tag = 'scoped memory for cross_output.1']
    %11 = vsyncpa [#allocation3], 0
    %s12 = scalar_lea.sflag [#allocation3], 1
    %13 = vsyncpa %s12, 0
    loop: start=0, step=1, limit=4
    $region2: #{cross_output.1} parent=1 // loop_pre_header
      _
    $region3: #{cross_output.1} parent=1 // loop_header
      %s15 = sphi 0, %s19
      %p16 = scmp.ge.s32.totalorder %s15, 4
      %s25 = sphi 0, %s27
      %s28 = sphi 0, %s25
      %s29 = sphi 0, %s28
      %s45 = sphi 0, %s29
      %s51 = sphi 0, %s53
      %s54 = sphi 0, %s51
      %s55 = sphi 0, %s54
      %s71 = sphi 0, %s55
      %s75 = sphi 0, %s75
      %s77 = sphi 0, %s75
      %s78 = sphi 0, %s77
      %s92 = sphi 0, %s78
      %s96 = sphi 0, %s96
      %s98 = sphi 0, %s96
      %s99 = sphi 0, %s98
      %s113 = sphi 0, %s99
      %s117 = sphi 0, %s117
      %s119 = sphi 0, %s117
      %s120 = sphi 0, %s119
      %s134 = sphi 0, %s120
      %s138 = sphi 0, %s138
      %s140 = sphi 0, %s138
      %s141 = sphi 0, %s140
      %s155 = sphi 0, %s141
      %s161 = sphi 0, %s163
      %s164 = sphi 0, %s161
      %s165 = sphi 0, %s164
      %s181 = sphi 0, %s165
    $region4: #{cross_output.1} parent=1 // loop_header_branch
      %18 = sbr.rel (%p16) target = $region8
    $region5: #{cross_output.1} parent=1 // loop_body
      %s20 = ssub.s32 %s15, 1
      %s21 = ssub.s32 %s15, 2
      %s22 = sadd.s32 %s15, 1
      %s23 = ssub.s32 %s15, %s22
      %p24 = scmp.eq.s32.totalorder %s23, 0
      %s26 = sadd.s32 %s25, 1
      %s27 = scalar_select %p24, %s25, %s26
      %p30 = pneg %p24
      %p31 = scmp.eq.s32.totalorder %s15, 1
      %p32 = por %p30, %p31
      %p33 = scmp.ne.s32.totalorder %s25, %s28
      %p34 = scmp.eq.s32.totalorder %s15, 0
      %p35 = por %p33, %p34
      %p36 = scmp.ne.s32.totalorder %s25, %s28
      %p37 = scmp.eq.s32.totalorder %s20, 1
      %p38 = por %p36, %p37
      %p39 = scmp.ne.s32.totalorder %s28, %s29
      %p40 = scmp.eq.s32.totalorder %s20, 0
      %p41 = por %p39, %p40
      %p42 = scmp.ne.s32.totalorder %s28, %s29
      %p43 = scmp.eq.s32.totalorder %s21, 1
      %p44 = por %p42, %p43
      %p46 = scmp.ne.s32.totalorder %s29, %s45
      %p47 = scmp.eq.s32.totalorder %s21, 0
      %p48 = por %p46, %p47
      %s49 = ssub.s32 %s15, %s22
      %p50 = scmp.eq.s32.totalorder %s49, 0
      %s52 = sadd.s32 %s51, 1
      %s53 = scalar_select %p50, %s51, %s52
      %p56 = pneg %p50
      %p57 = scmp.eq.s32.totalorder %s15, 1
      %p58 = por %p56, %p57
      %p59 = scmp.ne.s32.totalorder %s51, %s54
      %p60 = scmp.eq.s32.totalorder %s15, 0
      %p61 = por %p59, %p60
      %p62 = scmp.ne.s32.totalorder %s51, %s54
      %p63 = scmp.eq.s32.totalorder %s20, 1
      %p64 = por %p62, %p63
      %p65 = scmp.ne.s32.totalorder %s54, %s55
      %p66 = scmp.eq.s32.totalorder %s20, 0
      %p67 = por %p65, %p66
      %p68 = scmp.ne.s32.totalorder %s54, %s55
      %p69 = scmp.eq.s32.totalorder %s21, 1
      %p70 = por %p68, %p69
      %p72 = scmp.ne.s32.totalorder %s55, %s71
      %p73 = scmp.eq.s32.totalorder %s21, 0
      %p74 = por %p72, %p73
      %s76 = sadd.s32 %s75, 1
      %p79 = scmp.eq.s32.totalorder %s15, 1
      %p80 = scmp.ne.s32.totalorder %s75, %s77
      %p81 = scmp.eq.s32.totalorder %s15, 0
      %p82 = por %p80, %p81
      %p83 = scmp.ne.s32.totalorder %s75, %s77
      %p84 = scmp.eq.s32.totalorder %s20, 1
      %p85 = por %p83, %p84
      %p86 = scmp.ne.s32.totalorder %s77, %s78
      %p87 = scmp.eq.s32.totalorder %s20, 0
      %p88 = por %p86, %p87
      %p89 = scmp.ne.s32.totalorder %s77, %s78
      %p90 = scmp.eq.s32.totalorder %s21, 1
      %p91 = por %p89, %p90
      %p93 = scmp.ne.s32.totalorder %s78, %s92
      %p94 = scmp.eq.s32.totalorder %s21, 0
      %p95 = por %p93, %p94
      %s97 = sadd.s32 %s96, 1
      %p100 = scmp.eq.s32.totalorder %s15, 1
      %p101 = scmp.ne.s32.totalorder %s96, %s98
      %p102 = scmp.eq.s32.totalorder %s15, 0
      %p103 = por %p101, %p102
      %p104 = scmp.ne.s32.totalorder %s96, %s98
      %p105 = scmp.eq.s32.totalorder %s20, 1
      %p106 = por %p104, %p105
      %p107 = scmp.ne.s32.totalorder %s98, %s99
      %p108 = scmp.eq.s32.totalorder %s20, 0
      %p109 = por %p107, %p108
      %p110 = scmp.ne.s32.totalorder %s98, %s99
      %p111 = scmp.eq.s32.totalorder %s21, 1
      %p112 = por %p110, %p111
      %p114 = scmp.ne.s32.totalorder %s99, %s113
      %p115 = scmp.eq.s32.totalorder %s21, 0
      %p116 = por %p114, %p115
      %s118 = sadd.s32 %s117, 1
      %p121 = scmp.eq.s32.totalorder %s15, 1
      %p122 = scmp.ne.s32.totalorder %s117, %s119
      %p123 = scmp.eq.s32.totalorder %s15, 0
      %p124 = por %p122, %p123
      %p125 = scmp.ne.s32.totalorder %s117, %s119
      %p126 = scmp.eq.s32.totalorder %s20, 1
      %p127 = por %p125, %p126
      %p128 = scmp.ne.s32.totalorder %s119, %s120
      %p129 = scmp.eq.s32.totalorder %s20, 0
      %p130 = por %p128, %p129
      %p131 = scmp.ne.s32.totalorder %s119, %s120
      %p132 = scmp.eq.s32.totalorder %s21, 1
      %p133 = por %p131, %p132
      %p135 = scmp.ne.s32.totalorder %s120, %s134
      %p136 = scmp.eq.s32.totalorder %s21, 0
      %p137 = por %p135, %p136
      %s139 = sadd.s32 %s138, 1
      %p142 = scmp.eq.s32.totalorder %s15, 1
      %p143 = scmp.ne.s32.totalorder %s138, %s140
      %p144 = scmp.eq.s32.totalorder %s15, 0
      %p145 = por %p143, %p144
      %p146 = scmp.ne.s32.totalorder %s138, %s140
      %p147 = scmp.eq.s32.totalorder %s20, 1
      %p148 = por %p146, %p147
      %p149 = scmp.ne.s32.totalorder %s140, %s141
      %p150 = scmp.eq.s32.totalorder %s20, 0
      %p151 = por %p149, %p150
      %p152 = scmp.ne.s32.totalorder %s140, %s141
      %p153 = scmp.eq.s32.totalorder %s21, 1
      %p154 = por %p152, %p153
      %p156 = scmp.ne.s32.totalorder %s141, %s155
      %p157 = scmp.eq.s32.totalorder %s21, 0
      %p158 = por %p156, %p157
      %s159 = ssub.s32 %s15, %s22
      %p160 = scmp.eq.s32.totalorder %s159, 0
      %s162 = sadd.s32 %s161, 1
      %s163 = scalar_select %p160, %s161, %s162
      %p166 = pneg %p160
      %p167 = scmp.eq.s32.totalorder %s15, 1
      %p168 = por %p166, %p167
      %p169 = scmp.ne.s32.totalorder %s161, %s164
      %p170 = scmp.eq.s32.totalorder %s15, 0
      %p171 = por %p169, %p170
      %p172 = scmp.ne.s32.totalorder %s161, %s164
      %p173 = scmp.eq.s32.totalorder %s20, 1
      %p174 = por %p172, %p173
      %p175 = scmp.ne.s32.totalorder %s164, %s165
      %p176 = scmp.eq.s32.totalorder %s20, 0
      %p177 = por %p175, %p176
      %p178 = scmp.ne.s32.totalorder %s164, %s165
      %p179 = scmp.eq.s32.totalorder %s21, 1
      %p180 = por %p178, %p179
      %p182 = scmp.ne.s32.totalorder %s165, %s181
      %p183 = scmp.eq.s32.totalorder %s21, 0
      %p184 = por %p182, %p183
      %p185 = scmp.le.s32.totalorder 1, %s15
      %p186 = scmp.lt.s32.totalorder %s15, 3
      %p187 = pnand %p185, %p186
      %p188 = pneg %p187
      // Predicated region
      $region9: #{cross_output.1} parent=5 // pred_check
        _
      $region10: #{cross_output.1} parent=5 // pred_check_branch
        %190 = sbr.rel (%p187) target = $region12
      $region11: #{cross_output.1} parent=5 // pred_region
        %s191 = ssub.s32 %s15, 1
        // Predicated region
        $region13: #{cross_output.1} parent=11 // pred_check
          %p192 = pneg %p88
        $region14: #{cross_output.1} parent=11 // pred_check_branch
          %194 = sbr.rel (%p192) target = $region16
        $region15: #{cross_output.1} parent=11 // pred_region
          _
        $region16: #{cross_output.1} parent=11 // pred_fallthru
          _
        // Predicated region
        $region17: #{cross_output.1} parent=11 // pred_check
          %p195 = pneg %p109
        $region18: #{cross_output.1} parent=11 // pred_check_branch
          %197 = sbr.rel (%p195) target = $region20
        $region19: #{cross_output.1} parent=11 // pred_region
          _
        $region20: #{cross_output.1} parent=11 // pred_fallthru
          _
        // Predicated region
        $region21: #{cross_output.1} parent=11 // pred_check
          %p198 = pneg %p130
        $region22: #{cross_output.1} parent=11 // pred_check_branch
          %200 = sbr.rel (%p198) target = $region24
        $region23: #{cross_output.1} parent=11 // pred_region
          _
        $region24: #{cross_output.1} parent=11 // pred_fallthru
          _
        // Predicated region
        $region25: #{cross_output.1} parent=11 // pred_check
          %p201 = pneg %p151
        $region26: #{cross_output.1} parent=11 // pred_check_branch
          %203 = sbr.rel (%p201) target = $region28
        $region27: #{cross_output.1} parent=11 // pred_region
          _
        $region28: #{cross_output.1} parent=11 // pred_fallthru
          _
      $region12: #{cross_output.1} parent=5 // pred_fallthru
        _
      %p204 = scmp.lt.s32.totalorder %s15, 2
      // Predicated region
      $region29: #{cross_output.1} parent=5 // pred_check
        %p205 = pneg %p204
      $region30: #{cross_output.1} parent=5 // pred_check_branch
        %207 = sbr.rel (%p205) target = $region32
      $region31: #{cross_output.1} parent=5 // pred_region
        // Predicated region
        $region33: #{cross_output.1} parent=31 // pred_check
          %p208 = pneg %p35
        $region34: #{cross_output.1} parent=31 // pred_check_branch
          %210 = sbr.rel (%p208) target = $region36
        $region35: #{cross_output.1} parent=31 // pred_region
          %p211 = scmp.lt.s32.totalorder %s15, 1
          %s212 = scalar_select %p211, %s15, 1
          %s213 = smul.addr %s212, 8
          %s214 = scalar_lea.vmem %s0, %s213
        $region36: #{cross_output.1} parent=31 // pred_fallthru
          _
        // Predicated region
        $region37: #{cross_output.1} parent=31 // pred_check
          %p215 = pneg %p61
        $region38: #{cross_output.1} parent=31 // pred_check_branch
          %217 = sbr.rel (%p215) target = $region40
        $region39: #{cross_output.1} parent=31 // pred_region
          %p218 = scmp.lt.s32.totalorder %s15, 1
          %s219 = scalar_select %p218, %s15, 1
          %s220 = smul.addr %s219, 8
          %s221 = scalar_lea.vmem %s1, %s220
        $region40: #{cross_output.1} parent=31 // pred_fallthru
          _
      $region32: #{cross_output.1} parent=5 // pred_fallthru
        _
      %p222 = scmp.le.s32.totalorder 1, %s15
      %p223 = scmp.lt.s32.totalorder %s15, 3
      %p224 = pnand %p222, %p223
      %p225 = pneg %p224
      // Predicated region
      $region41: #{cross_output.1} parent=5 // pred_check
        _
      $region42: #{cross_output.1} parent=5 // pred_check_branch
        %227 = sbr.rel (%p224) target = $region44
      $region43: #{cross_output.1} parent=5 // pred_region
        %s228 = ssub.s32 %s15, 1
        %p229 = scmp.lt.s32.totalorder %s20, 1
        %s230 = scalar_select %p229, %s20, 1
        %s231 = smul.addr %s230, 8
        %s232 = scalar_lea.vmem %s0, %s231
        %p233 = pneg %p41
        %p234 = pneg %p38
        %p235 = scmp.lt.s32.totalorder %s20, 1
        %s236 = scalar_select %p235, %s20, 1
        %s237 = smul.addr %s236, 8
        %s238 = scalar_lea.vmem %s1, %s237
        %p239 = pneg %p67
        %p240 = pneg %p64
        %p241 = pneg %p88
        %p242 = pneg %p85
        %p243 = pneg %p109
        %p244 = pneg %p106
        %p245 = pneg %p130
        %p246 = pneg %p127
        %p247 = pneg %p151
        %p248 = pneg %p148
        %p249 = pneg %p177
        %p250 = pneg %p174
        %s251 = sand.u32 %s164, 1
        %s252 = scalar_lea.sflag [#allocation3], %s251
        %s253 = sand.u32 %s164, 1
        %s254 = smul.addr %s253, 8
        %s255 = scalar_lea.vmem [#allocation2], %s254
        %p256 = scmp.lt.s32.totalorder %s20, 1
        %s257 = scalar_select %p256, %s20, 1
        %s258 = smul.addr %s257, 8
        %s259 = scalar_lea.vmem %s0, %s258
        %p260 = scmp.lt.s32.totalorder %s20, 1
        %s261 = scalar_select %p260, %s20, 1
        %s262 = smul.addr %s261, 8
        %s263 = scalar_lea.vmem %s1, %s262
        %v264 = vld [vmem:[%s259] sm:$0xff]
        %v265 = vld [vmem:[%s2] sm:$0xff]
        %v266 = vld [vmem:[%s2 + $0x8] sm:$0xff]
        %v267 = vld [vmem:[%s2 + $0x10] sm:$0xff]
        %v268 = vld [vmem:[%s2 + $0x18] sm:$0xff]
        %v269 = vld [vmem:[%s2 + $0x20] sm:$0xff]
        %v270 = vld [vmem:[%s2 + $0x28] sm:$0xff]
        %v271 = vld [vmem:[%s2 + $0x30] sm:$0xff]
        %v272 = vld [vmem:[%s2 + $0x38] sm:$0xff]
        %v273 = vld [vmem:[%s2 + $0x40] sm:$0xff]
        %v274 = vld [vmem:[%s2 + $0x48] sm:$0xff]
        %v275 = vld [vmem:[%s2 + $0x50] sm:$0xff]
        %v276 = vld [vmem:[%s2 + $0x58] sm:$0xff]
        %v277 = vld [vmem:[%s2 + $0x60] sm:$0xff]
        %v278 = vld [vmem:[%s2 + $0x68] sm:$0xff]
        %v279 = vld [vmem:[%s2 + $0x70] sm:$0xff]
        %v280 = vld [vmem:[%s2 + $0x78] sm:$0xff]
        %v281 = vld [vmem:[%s263] sm:$0xff]
        %v282 = vld [vmem:[%s3] sm:$0x1]
        %v284 = vperm.slane %v282, 0
        %v286 = vadd.f32 %v281, %v284
        %287 = vmatpush.msra.mxu0 %v280
        %288 = vmatpush.msra.mxu0 %v279
        %289 = vmatpush.msra.mxu0 %v278
        %290 = vmatpush.msra.mxu0 %v277
        %291 = vmatpush.msra.mxu0 %v276
        %292 = vmatpush.msra.mxu0 %v275
        %293 = vmatpush.msra.mxu0 %v274
        %294 = vmatpush.msra.mxu0 %v273
        %295 = vmatpush.msra.mxu0 %v272
        %296 = vmatpush.msra.mxu0 %v271
        %297 = vmatpush.msra.mxu0 %v270
        %298 = vmatpush.msra.mxu0 %v269
        %299 = vmatpush.msra.mxu0 %v268
        %300 = vmatpush.msra.mxu0 %v267
        %301 = vmatpush.msra.mxu0 %v266
        %302 = vmatpush.msra.mxu0 %v265
        %303 = vmatmul.f32.gmra.mxu0 %v264
        %v304 = vpop.f32.mrf.mxu0
        %v305 = vadd.f32 %v286, %v304
        %306 = vdwg.mxu0
        %vm307 = vcmask 261120
        %v308 = vsel %vm307, %v305, 0.0
        %309 = vadd.xlane.f32.xlu0 %v308
        %v310 = vpop.xlane.xlu0 %309
        %v311 = vmul.f32 %v305, %v305
        %v312 = vsel %vm307, %v311, 0.0
        %313 = vadd.xlane.f32.xlu0 %v312
        %v314 = vpop.xlane.xlu0 %313
        %v315 = vmul.f32 %v310, 0.03125
        %v316 = vmul.f32 %v314, 0.03125
        %v317 = vmul.f32 %v315, %v315
        %v318 = vsub.f32 %v316, %v317
        %v319 = vmax.f32 %v318, 0.0
        %v320 = vadd.f32 %v319, 1e-12
        %v321 = vrsqrt.pop %v320
        %v322 = vmul.f32 %v321, %v320
        %v323 = vmul.f32 %v322, %v321
        %v324 = vmul.f32 0.5, %v323
        %v325 = vsub.f32 1.5, %v324
        %v326 = vmul.f32 %v321, %v325
        %vm327 = vweird.f32 %v320
        %vm328 = vweird.f32 %v321
        %vm329 = vmor %vm327, %vm328
        %v330 = vsel %vm329, %v321, %v326
        %v331 = vsub.f32 %v305, %v315
        %v332 = vmul.f32 %v331, %v330
        %v333 = vld [vmem:[%s4] sm:$0x1]
        %v335 = vperm.slane %v333, 0
        %v337 = vmul.f32 %v332, %v335
        %v338 = vld [vmem:[%s5] sm:$0x1]
        %v340 = vperm.slane %v338, 0
        %v342 = vadd.f32 %v337, %v340
        %343 = vst.msk [vmem:[%s255] sm:$0xff] %vm307, %v342
        %s344 = sand.u32 %s164, 1
        %s345 = scalar_lea.sflag [#allocation3], %s344
        %s346 = sand.u32 %s164, 1
        %s347 = smul.addr %s346, 8
        %s348 = scalar_lea.vmem [#allocation2], %s347
        // Predicated region
        $region45: #{cross_output.1} parent=43 // pred_check
          %p349 = pneg %p174
        $region46: #{cross_output.1} parent=43 // pred_check_branch
          %351 = sbr.rel (%p349) target = $region48
        $region47: #{cross_output.1} parent=43 // pred_region
          %353 = vsyncadd %s345, 0
          %s354 = smul.addr %s20, 8
          %s355 = scalar_lea.hbm %s6, %s354
          %s357 = sshll.u32 %s348, 4
          %s358 = int_to_ptr.vmem [resolvable:$true] %s357
          %s359 = sshll.u32 %s355, 4
          %s360 = int_to_ptr.hbm [resolvable:$true] %s359
          %362 = dma.vmem_to_hbm [thread:$0]  %s358, 128, %s360, %s345
        $region48: #{cross_output.1} parent=43 // pred_fallthru
          _
      $region44: #{cross_output.1} parent=5 // pred_fallthru
        _
      %p363 = scmp.le.s32.totalorder 2, %s15
      // Predicated region
      $region49: #{cross_output.1} parent=5 // pred_check
        %p364 = pneg %p363
      $region50: #{cross_output.1} parent=5 // pred_check_branch
        %366 = sbr.rel (%p364) target = $region52
      $region51: #{cross_output.1} parent=5 // pred_region
        %s367 = ssub.s32 %s15, 2
        // Predicated region
        $region53: #{cross_output.1} parent=51 // pred_check
          %p368 = pneg %p180
        $region54: #{cross_output.1} parent=51 // pred_check_branch
          %370 = sbr.rel (%p368) target = $region56
        $region55: #{cross_output.1} parent=51 // pred_region
          %s371 = sand.u32 %s165, 1
          %s372 = scalar_lea.sflag [#allocation3], %s371
          %s373 = sand.u32 %s165, 1
          %s374 = smul.addr %s373, 8
          %s375 = scalar_lea.vmem [#allocation2], %s374
          %377 = dma.done %s372, 128
        $region56: #{cross_output.1} parent=51 // pred_fallthru
          _
      $region52: #{cross_output.1} parent=5 // pred_fallthru
        _
    $region6: #{cross_output.1} parent=1 // loop_footer
      %s19 = sadd.s32 1, %s15
    $region7: #{cross_output.1} parent=1 // loop_footer_branch
      %14 = sbr.rel target = $region3
    $region8: #{cross_output.1} parent=1 // loop_exit
      _
    %378 = vsyncpa [#allocation3], 1
    %s379 = scalar_lea.sflag [#allocation3], 1
    %380 = vsyncpa %s379, 1

</llo_original>
